<compile_context>
chip_gen: v6e
topology: v6e:2x2x1
jax: 0.10.0
libtpu: 0.0.40
codegen_flags: <defaults>
</compile_context>

<pallas_src>
import jax
import jax.numpy as jnp
from jax.experimental import pallas as pl
from jax.experimental.pallas import tpu as pltpu


def transition_kernel(x_ref, s_ref, b_ref, wt_ref, out_ref):
    # x_ref  : (1, 4*Cin, TM)  window-stacked (tap-major) activation tile
    # s_ref  : (4*Cin, 1)      folded BN scale, tiled over the 4 taps
    # b_ref  : (4*Cin, 1)      folded BN shift, tiled over the 4 taps
    # wt_ref : (Cout, Cin)     transposed 1x1 conv weight, pre-scaled by 0.25
    # out_ref: (1, Cout, TM)
    cin = wt_ref.shape[1]
    x = x_ref[0]                                               # (4*Cin, TM)

    # BatchNorm (folded, eval mode) + ReLU, elementwise on the VPU.
    t = jnp.maximum(x * s_ref[...] + b_ref[...], 0.0)          # (4*Cin, TM)

    # 2x2 average pool = sum of the 4 taps (0.25 folded into the weight): 3 VPU adds.
    pooled = t[0:cin]
    for k in range(1, 4):
        pooled = pooled + t[k * cin:(k + 1) * cin]             # (Cin, TM)

    # 1x1 transposed conv as a single MXU matmul with K = Cin (4x fewer MACs).
    out_ref[0] = jnp.dot(wt_ref[...], pooled,
                         preferred_element_type=jnp.float32).astype(out_ref.dtype)


def _round_up(a, b):
    return (a + b - 1) // b * b


def transition_block1(x_nchw, params, eps=1e-5):
    """x_nchw: (N, Cin, H, W). Returns (N, Cout, H//2, W//2) like the PyTorch module."""
    g1, b1, m1, v1, w1 = params                   # w1: (in_planes, out_planes, 1, 1)
    N, Cin, H, W = x_nchw.shape
    assert H % 2 == 0 and W % 2 == 0, "avg_pool2d(2) path here assumes even H and W"
    Cout = w1.shape[1]
    Ho, Wo = H // 2, W // 2
    rows = Ho * Wo

    # Fold eval-mode BatchNorm into per-channel scale/shift (applied before ReLU,
    # so it cannot be folded into the conv weight). Tiled over the 4 window taps.
    inv = g1 / jnp.sqrt(v1 + eps)
    s_t = jnp.tile(inv, 4).reshape(4 * Cin, 1).astype(jnp.float32)
    sh_t = jnp.tile(b1 - m1 * inv, 4).reshape(4 * Cin, 1).astype(jnp.float32)

    # ConvTranspose2d 1x1 stride 1: out[o] = sum_i t[i] * w[i, o]. Fold the 0.25 of the
    # (commuted) 2x2 average pool into the weight.
    wt = (w1[:, :, 0, 0].T * 0.25).astype(jnp.float32)          # (Cout, Cin)

    # NCHW -> (N, 4*Cin, Ho*Wo): tap-major (dh, dw, channel) on the sublane axis,
    # flattened output spatial positions on the lane axis. Single fused XLA relayout,
    # eligible for fusion into the Pallas input via allow_input_fusion.
    x_t = (x_nchw.astype(jnp.float32)
           .reshape(N, Cin, Ho, 2, Wo, 2)
           .transpose(0, 3, 5, 1, 2, 4)                         # (N, dh, dw, Cin, Ho, Wo)
           .reshape(N, 4 * Cin, rows))

    # Row tile: lane-dense (multiple of 128), capped at 512 rows per grid step.
    TM = min(512, _round_up(rows, 128))
    rows_pad = _round_up(rows, TM)
    if rows_pad != rows:
        x_t = jnp.pad(x_t, ((0, 0), (0, 0), (0, rows_pad - rows)))

    cost = pl.CostEstimate(
        flops=2 * N * rows_pad * Cin * Cout + 6 * N * rows_pad * 4 * Cin,
        transcendentals=0,
        bytes_accessed=4 * (x_t.size + N * Cout * rows_pad + Cout * Cin + 8 * Cin),
    )

    out_t = pl.pallas_call(
        transition_kernel,
        out_shape=jax.ShapeDtypeStruct((N, Cout, rows_pad), jnp.float32),
        grid_spec=pltpu.PrefetchScalarGridSpec(
            num_scalar_prefetch=0,
            grid=(N, rows_pad // TM),
            in_specs=[
                pl.BlockSpec((1, 4 * Cin, TM), lambda n, r: (n, 0, r)),
                pl.BlockSpec((4 * Cin, 1), lambda n, r: (0, 0)),
                pl.BlockSpec((4 * Cin, 1), lambda n, r: (0, 0)),
                pl.BlockSpec((Cout, Cin), lambda n, r: (0, 0)),
            ],
            out_specs=pl.BlockSpec((1, Cout, TM), lambda n, r: (n, 0, r)),
        ),
        compiler_params=pltpu.CompilerParams(
            dimension_semantics=("parallel", "parallel"),
            allow_input_fusion=[True, False, False, False],
        ),
        cost_estimate=cost,
    )(x_t, s_t, sh_t, wt)

    # Output is already NCHW-ordered: drop the lane padding and split the spatial axis.
    return out_t[:, :, :rows].reshape(N, Cout, Ho, Wo)


def reference(x, params, eps=1e-5):
    g1, b1, m1, v1, w1 = params
    # BatchNorm (eval) + ReLU
    h = ((x - m1[None, :, None, None]) / jnp.sqrt(v1[None, :, None, None] + eps)
         * g1[None, :, None, None] + b1[None, :, None, None])
    h = jnp.maximum(h, 0.0)
    # ConvTranspose2d(k=1, s=1, p=0, bias=False): weight indexed [in, out, 1, 1]
    h = jnp.einsum('nihw,io->nohw', h, w1[:, :, 0, 0])
    # avg_pool2d(out, 2)
    N, C, H, W = h.shape
    return h.reshape(N, C, H // 2, 2, W // 2, 2).mean(axis=(3, 5))


if __name__ == "__main__":
    N, in_planes, out_planes, H, W = 2, 4, 4, 16, 16

    key = jax.random.PRNGKey(0)
    ks = jax.random.split(key, 6)
    x = jax.random.normal(ks[0], (N, in_planes, H, W), jnp.float32)

    # Deterministic synthetic BN stats + transposed-conv weight (in, out, 1, 1).
    g1 = jax.random.uniform(ks[1], (in_planes,), jnp.float32, 0.5, 1.5)
    b1 = jax.random.normal(ks[2], (in_planes,), jnp.float32) * 0.1
    m1 = jax.random.normal(ks[3], (in_planes,), jnp.float32) * 0.1
    v1 = jax.random.uniform(ks[4], (in_planes,), jnp.float32, 0.5, 1.5)
    w1 = jax.random.normal(ks[5], (in_planes, out_planes, 1, 1), jnp.float32) * 0.2

    params = (g1, b1, m1, v1, w1)

    out = jax.block_until_ready(transition_block1(x, params))
    ref = jax.block_until_ready(reference(x, params))

    assert out.shape == (N, out_planes, H // 2, W // 2), out.shape
    assert jnp.allclose(out, ref, atol=1e-4, rtol=1e-4), float(jnp.max(jnp.abs(out - ref)))

    print("KERNEL_OK")
</pallas_src>

<mosaic_0001>
module attributes {stable_mosaic.version = 11 : i64} {
  func.func @transition_kernel(%arg0: i32, %arg1: i32, %arg2: memref<1x16x128xf32, #tpu.memory_space<vmem>>, %arg3: memref<16x1xf32, #tpu.memory_space<vmem>>, %arg4: memref<16x1xf32, #tpu.memory_space<vmem>>, %arg5: memref<4x4xf32, #tpu.memory_space<vmem>>, %arg6: memref<1x4x128xf32, #tpu.memory_space<vmem>>) attributes {dimension_semantics = [#tpu.dimension_semantics<parallel>, #tpu.dimension_semantics<parallel>], iteration_bounds = array<i64: 2, 1>, scalar_prefetch = 0 : i64, scratch_operands = 0 : i64, tpu.core_type = #tpu.core_type<tc>, window_params = [{transform_indices = @transform_0, window_bounds = array<i64: 1, 16, 128>}, {pipeline_mode = #tpu.pipeline_mode<synchronous>, transform_indices = @transform_1, window_bounds = array<i64: 16, 1>}, {pipeline_mode = #tpu.pipeline_mode<synchronous>, transform_indices = @transform_2, window_bounds = array<i64: 16, 1>}, {pipeline_mode = #tpu.pipeline_mode<synchronous>, transform_indices = @transform_3, window_bounds = array<i64: 4, 4>}, {transform_indices = @transform_4, window_bounds = array<i64: 1, 4, 128>}]} {
    %c0 = arith.constant 0 : index
    %c0_0 = arith.constant 0 : index
    %c0_1 = arith.constant 0 : index
    %0 = vector.load %arg2[%c0, %c0_0, %c0_1] : memref<1x16x128xf32, #tpu.memory_space<vmem>>, vector<1x16x128xf32>
    %1 = vector.shape_cast %0 : vector<1x16x128xf32> to vector<16x128xf32>
    %c0_2 = arith.constant 0 : index
    %c0_3 = arith.constant 0 : index
    %2 = vector.load %arg3[%c0_2, %c0_3] : memref<16x1xf32, #tpu.memory_space<vmem>>, vector<16x1xf32>
    %3 = vector.broadcast %2 : vector<16x1xf32> to vector<16x128xf32>
    %4 = arith.mulf %1, %3 : vector<16x128xf32>
    %c0_4 = arith.constant 0 : index
    %c0_5 = arith.constant 0 : index
    %5 = vector.load %arg4[%c0_4, %c0_5] : memref<16x1xf32, #tpu.memory_space<vmem>>, vector<16x1xf32>
    %6 = vector.broadcast %5 : vector<16x1xf32> to vector<16x128xf32>
    %7 = arith.addf %4, %6 : vector<16x128xf32>
    %cst = arith.constant 0.000000e+00 : f32
    %8 = vector.broadcast %cst : f32 to vector<16x128xf32>
    %9 = arith.maximumf %7, %8 : vector<16x128xf32>
    %10 = vector.extract_strided_slice %9 {offsets = [0, 0], sizes = [4, 128], strides = [1, 1]} : vector<16x128xf32> to vector<4x128xf32>
    %11 = vector.extract_strided_slice %9 {offsets = [4, 0], sizes = [4, 128], strides = [1, 1]} : vector<16x128xf32> to vector<4x128xf32>
    %12 = arith.addf %10, %11 : vector<4x128xf32>
    %13 = vector.extract_strided_slice %9 {offsets = [8, 0], sizes = [4, 128], strides = [1, 1]} : vector<16x128xf32> to vector<4x128xf32>
    %14 = arith.addf %12, %13 : vector<4x128xf32>
    %15 = vector.extract_strided_slice %9 {offsets = [12, 0], sizes = [4, 128], strides = [1, 1]} : vector<16x128xf32> to vector<4x128xf32>
    %16 = arith.addf %14, %15 : vector<4x128xf32>
    %c0_6 = arith.constant 0 : index
    %c0_7 = arith.constant 0 : index
    %17 = vector.load %arg5[%c0_6, %c0_7] : memref<4x4xf32, #tpu.memory_space<vmem>>, vector<4x4xf32>
    %cst_8 = arith.constant dense<0.000000e+00> : vector<4x128xf32>
    %18 = tpu.matmul %17, %16, %cst_8 {dimension_numbers = #tpu.dot_dimension_numbers<[1], [0], [0], [1], [0, 0, 1, 1], [], []>} : vector<4x4xf32>, vector<4x128xf32>, vector<4x128xf32> -> vector<4x128xf32>
    %c0_9 = arith.constant 0 : index
    %c0_10 = arith.constant 0 : index
    %c0_11 = arith.constant 0 : index
    %19 = vector.load %arg6[%c0_9, %c0_10, %c0_11] : memref<1x4x128xf32, #tpu.memory_space<vmem>>, vector<1x4x128xf32>
    %20 = vector.shape_cast %19 : vector<1x4x128xf32> to vector<4x128xf32>
    %21 = vector.shape_cast %18 : vector<4x128xf32> to vector<1x4x128xf32>
    tpu.vector_store %arg6[%c0_9, %c0_10, %c0_11], %21 {strides = array<i32>} : memref<1x4x128xf32, #tpu.memory_space<vmem>>, vector<1x4x128xf32>,
    return
  }
  func.func @transform_0(%arg0: i32, %arg1: i32) -> (i32, i32, i32) {
    %c0_i32 = arith.constant 0 : i32
    %c0_i32_0 = arith.constant 0 : i32
    return %arg0, %c0_i32, %arg1 : i32, i32, i32
  }
  func.func @transform_1(%arg0: i32, %arg1: i32) -> (i32, i32) {
    %c0_i32 = arith.constant 0 : i32
    %c0_i32_0 = arith.constant 0 : i32
    %c0_i32_1 = arith.constant 0 : i32
    return %c0_i32, %c0_i32_0 : i32, i32
  }
  func.func @transform_2(%arg0: i32, %arg1: i32) -> (i32, i32) {
    %c0_i32 = arith.constant 0 : i32
    %c0_i32_0 = arith.constant 0 : i32
    %c0_i32_1 = arith.constant 0 : i32
    return %c0_i32, %c0_i32_0 : i32, i32
  }
  func.func @transform_3(%arg0: i32, %arg1: i32) -> (i32, i32) {
    %c0_i32 = arith.constant 0 : i32
    %c0_i32_0 = arith.constant 0 : i32
    %c0_i32_1 = arith.constant 0 : i32
    return %c0_i32, %c0_i32_0 : i32, i32
  }
  func.func @transform_4(%arg0: i32, %arg1: i32) -> (i32, i32, i32) {
    %c0_i32 = arith.constant 0 : i32
    %c0_i32_0 = arith.constant 0 : i32
    return %arg0, %c0_i32, %arg1 : i32, i32, i32
  }
}

</mosaic_0001>

<llo_original>
// kernel: tpu_custom_call.1
$region0: #{tpu_custom_call.1}
  #allocation0 [shape = 'u32[]', space=smem, size = 0x4, offset = 0x4, fixed_abs, tag = 'smem constant byte address 0x4 - core index']
  #allocation1 [shape = 'u32[144,128]{1,0:T(1,128)}', space=vmem, size = 0x12000, scoped, tag = 'internal scratch']
  %s0 = inlined_call_operand.vmem [shape: f32[2,16,128], index: 0, kind: input, shape index: {}]
  %s1 = inlined_call_operand.vmem [shape: f32[16,1], index: 1, kind: input, shape index: {}]
  %s2 = inlined_call_operand.vmem [shape: f32[16,1], index: 2, kind: input, shape index: {}]
  %s3 = inlined_call_operand.vmem [shape: f32[4,4], index: 3, kind: input, shape index: {}]
  %s4 = inlined_call_operand.hbm [shape: f32[2,4,128], index: 4, kind: output, shape index: {}]
  %s5 = sld [smem:[#allocation0]]
  $region49: #{tpu_custom_call.1} parent=0
    _
  %s7 = ssub.s32 1, %s5
  %s8 = scalar_select 0, %s7, %s5
  $region1: #{tpu_custom_call.1} parent=0
    #allocation2 [shape = 'u8[4096]{0}', space=vmem, size = 0x1000, scoped, tag = 'output window, operand 0']
    #allocation3 [shape = 's32[2]{0}', space=sflag, size = 0x8, scoped, tag = 'scoped memory for tpu_custom_call.1']
    %9 = vsyncpa [#allocation3], 0
    %s10 = scalar_lea.sflag [#allocation3], 1
    %11 = vsyncpa %s10, 0
    loop: start=0, step=1, limit=4
    $region2: #{tpu_custom_call.1} parent=1 // loop_pre_header
      _
    $region3: #{tpu_custom_call.1} parent=1 // loop_header
      %s13 = sphi 0, %s17
      %p14 = scmp.ge.s32.totalorder %s13, 4
      %s20 = sphi 0, %s32
      %s21 = sphi 0, %s28
      %s22 = sphi 0, %s20
      %s23 = sphi 0, %s21
      %s24 = sphi 0, %s22
      %s25 = sphi 0, %s23
      %s37 = sphi 0, %s39
      %s40 = sphi 0, %s37
      %s41 = sphi 0, %s40
      %s57 = sphi 0, %s41
      %s61 = sphi 0, %s61
      %s63 = sphi 0, %s61
      %s64 = sphi 0, %s63
      %s78 = sphi 0, %s64
      %s82 = sphi 0, %s82
      %s84 = sphi 0, %s82
      %s85 = sphi 0, %s84
      %s99 = sphi 0, %s85
      %s103 = sphi 0, %s103
      %s105 = sphi 0, %s103
      %s106 = sphi 0, %s105
      %s120 = sphi 0, %s106
      %s128 = sphi 0, %s130
      %s131 = sphi 0, %s128
      %s132 = sphi 0, %s131
      %s148 = sphi 0, %s132
    $region4: #{tpu_custom_call.1} parent=1 // loop_header_branch
      %16 = sbr.rel (%p14) target = $region8
    $region5: #{tpu_custom_call.1} parent=1 // loop_body
      %s18 = ssub.s32 %s13, 1
      %s19 = ssub.s32 %s13, 2
      %s26 = sadd.s32 1, %s21
      %p27 = scmp.ge.s32.totalorder %s26, 1
      %s28 = scalar_select %p27, 0, %s26
      %s29 = sadd.s32 1, %s20
      %s30 = scalar_select %p27, %s29, %s20
      %p31 = scmp.ge.s32.totalorder %s30, 2
      %s32 = scalar_select %p31, 0, %s30
      %s33 = ssub.s32 %s20, %s32
      %s34 = ssub.s32 %s21, %s28
      %s35 = sor.u32 %s33, %s34
      %p36 = scmp.eq.s32.totalorder %s35, 0
      %s38 = sadd.s32 %s37, 1
      %s39 = scalar_select %p36, %s37, %s38
      %p42 = pneg %p36
      %p43 = scmp.eq.s32.totalorder %s13, 1
      %p44 = por %p42, %p43
      %p45 = scmp.ne.s32.totalorder %s37, %s40
      %p46 = scmp.eq.s32.totalorder %s13, 0
      %p47 = por %p45, %p46
      %p48 = scmp.ne.s32.totalorder %s37, %s40
      %p49 = scmp.eq.s32.totalorder %s18, 1
      %p50 = por %p48, %p49
      %p51 = scmp.ne.s32.totalorder %s40, %s41
      %p52 = scmp.eq.s32.totalorder %s18, 0
      %p53 = por %p51, %p52
      %p54 = scmp.ne.s32.totalorder %s40, %s41
      %p55 = scmp.eq.s32.totalorder %s19, 1
      %p56 = por %p54, %p55
      %p58 = scmp.ne.s32.totalorder %s41, %s57
      %p59 = scmp.eq.s32.totalorder %s19, 0
      %p60 = por %p58, %p59
      %s62 = sadd.s32 %s61, 1
      %p65 = scmp.eq.s32.totalorder %s13, 1
      %p66 = scmp.ne.s32.totalorder %s61, %s63
      %p67 = scmp.eq.s32.totalorder %s13, 0
      %p68 = por %p66, %p67
      %p69 = scmp.ne.s32.totalorder %s61, %s63
      %p70 = scmp.eq.s32.totalorder %s18, 1
      %p71 = por %p69, %p70
      %p72 = scmp.ne.s32.totalorder %s63, %s64
      %p73 = scmp.eq.s32.totalorder %s18, 0
      %p74 = por %p72, %p73
      %p75 = scmp.ne.s32.totalorder %s63, %s64
      %p76 = scmp.eq.s32.totalorder %s19, 1
      %p77 = por %p75, %p76
      %p79 = scmp.ne.s32.totalorder %s64, %s78
      %p80 = scmp.eq.s32.totalorder %s19, 0
      %p81 = por %p79, %p80
      %s83 = sadd.s32 %s82, 1
      %p86 = scmp.eq.s32.totalorder %s13, 1
      %p87 = scmp.ne.s32.totalorder %s82, %s84
      %p88 = scmp.eq.s32.totalorder %s13, 0
      %p89 = por %p87, %p88
      %p90 = scmp.ne.s32.totalorder %s82, %s84
      %p91 = scmp.eq.s32.totalorder %s18, 1
      %p92 = por %p90, %p91
      %p93 = scmp.ne.s32.totalorder %s84, %s85
      %p94 = scmp.eq.s32.totalorder %s18, 0
      %p95 = por %p93, %p94
      %p96 = scmp.ne.s32.totalorder %s84, %s85
      %p97 = scmp.eq.s32.totalorder %s19, 1
      %p98 = por %p96, %p97
      %p100 = scmp.ne.s32.totalorder %s85, %s99
      %p101 = scmp.eq.s32.totalorder %s19, 0
      %p102 = por %p100, %p101
      %s104 = sadd.s32 %s103, 1
      %p107 = scmp.eq.s32.totalorder %s13, 1
      %p108 = scmp.ne.s32.totalorder %s103, %s105
      %p109 = scmp.eq.s32.totalorder %s13, 0
      %p110 = por %p108, %p109
      %p111 = scmp.ne.s32.totalorder %s103, %s105
      %p112 = scmp.eq.s32.totalorder %s18, 1
      %p113 = por %p111, %p112
      %p114 = scmp.ne.s32.totalorder %s105, %s106
      %p115 = scmp.eq.s32.totalorder %s18, 0
      %p116 = por %p114, %p115
      %p117 = scmp.ne.s32.totalorder %s105, %s106
      %p118 = scmp.eq.s32.totalorder %s19, 1
      %p119 = por %p117, %p118
      %p121 = scmp.ne.s32.totalorder %s106, %s120
      %p122 = scmp.eq.s32.totalorder %s19, 0
      %p123 = por %p121, %p122
      %s124 = ssub.s32 %s20, %s32
      %s125 = ssub.s32 %s21, %s28
      %s126 = sor.u32 %s124, %s125
      %p127 = scmp.eq.s32.totalorder %s126, 0
      %s129 = sadd.s32 %s128, 1
      %s130 = scalar_select %p127, %s128, %s129
      %p133 = pneg %p127
      %p134 = scmp.eq.s32.totalorder %s13, 1
      %p135 = por %p133, %p134
      %p136 = scmp.ne.s32.totalorder %s128, %s131
      %p137 = scmp.eq.s32.totalorder %s13, 0
      %p138 = por %p136, %p137
      %p139 = scmp.ne.s32.totalorder %s128, %s131
      %p140 = scmp.eq.s32.totalorder %s18, 1
      %p141 = por %p139, %p140
      %p142 = scmp.ne.s32.totalorder %s131, %s132
      %p143 = scmp.eq.s32.totalorder %s18, 0
      %p144 = por %p142, %p143
      %p145 = scmp.ne.s32.totalorder %s131, %s132
      %p146 = scmp.eq.s32.totalorder %s19, 1
      %p147 = por %p145, %p146
      %p149 = scmp.ne.s32.totalorder %s132, %s148
      %p150 = scmp.eq.s32.totalorder %s19, 0
      %p151 = por %p149, %p150
      %p152 = scmp.le.s32.totalorder 1, %s13
      %p153 = scmp.lt.s32.totalorder %s13, 3
      %p154 = pnand %p152, %p153
      %p155 = pneg %p154
      // Predicated region
      $region9: #{tpu_custom_call.1} parent=5 // pred_check
        _
      $region10: #{tpu_custom_call.1} parent=5 // pred_check_branch
        %157 = sbr.rel (%p154) target = $region12
      $region11: #{tpu_custom_call.1} parent=5 // pred_region
        %s158 = ssub.s32 %s13, 1
        // Predicated region
        $region13: #{tpu_custom_call.1} parent=11 // pred_check
          %p159 = pneg %p74
        $region14: #{tpu_custom_call.1} parent=11 // pred_check_branch
          %161 = sbr.rel (%p159) target = $region16
        $region15: #{tpu_custom_call.1} parent=11 // pred_region
          _
        $region16: #{tpu_custom_call.1} parent=11 // pred_fallthru
          _
        // Predicated region
        $region17: #{tpu_custom_call.1} parent=11 // pred_check
          %p162 = pneg %p95
        $region18: #{tpu_custom_call.1} parent=11 // pred_check_branch
          %164 = sbr.rel (%p162) target = $region20
        $region19: #{tpu_custom_call.1} parent=11 // pred_region
          _
        $region20: #{tpu_custom_call.1} parent=11 // pred_fallthru
          _
        // Predicated region
        $region21: #{tpu_custom_call.1} parent=11 // pred_check
          %p165 = pneg %p116
        $region22: #{tpu_custom_call.1} parent=11 // pred_check_branch
          %167 = sbr.rel (%p165) target = $region24
        $region23: #{tpu_custom_call.1} parent=11 // pred_region
          _
        $region24: #{tpu_custom_call.1} parent=11 // pred_fallthru
          _
      $region12: #{tpu_custom_call.1} parent=5 // pred_fallthru
        _
      %p168 = scmp.lt.s32.totalorder %s13, 2
      // Predicated region
      $region25: #{tpu_custom_call.1} parent=5 // pred_check
        %p169 = pneg %p168
      $region26: #{tpu_custom_call.1} parent=5 // pred_check_branch
        %171 = sbr.rel (%p169) target = $region28
      $region27: #{tpu_custom_call.1} parent=5 // pred_region
        // Predicated region
        $region29: #{tpu_custom_call.1} parent=27 // pred_check
          %p172 = pneg %p47
        $region30: #{tpu_custom_call.1} parent=27 // pred_check_branch
          %174 = sbr.rel (%p172) target = $region32
        $region31: #{tpu_custom_call.1} parent=27 // pred_region
          %p175 = scmp.lt.s32.totalorder %s20, 1
          %s176 = scalar_select %p175, %s20, 1
          %p177 = scmp.lt.s32.totalorder %s21, 0
          %s178 = scalar_select %p177, %s21, 0
          %s179 = smul.addr %s176, 2
          %s180 = sadd.s32 %s178, %s179
          %s181 = smul.addr %s180, 8
          %s182 = scalar_lea.vmem %s0, %s181
        $region32: #{tpu_custom_call.1} parent=27 // pred_fallthru
          _
      $region28: #{tpu_custom_call.1} parent=5 // pred_fallthru
        _
      %p183 = scmp.le.s32.totalorder 1, %s13
      %p184 = scmp.lt.s32.totalorder %s13, 3
      %p185 = pnand %p183, %p184
      %p186 = pneg %p185
      // Predicated region
      $region33: #{tpu_custom_call.1} parent=5 // pred_check
        _
      $region34: #{tpu_custom_call.1} parent=5 // pred_check_branch
        %188 = sbr.rel (%p185) target = $region36
      $region35: #{tpu_custom_call.1} parent=5 // pred_region
        %s189 = ssub.s32 %s13, 1
        %p190 = scmp.lt.s32.totalorder %s22, 1
        %s191 = scalar_select %p190, %s22, 1
        %p192 = scmp.lt.s32.totalorder %s23, 0
        %s193 = scalar_select %p192, %s23, 0
        %s194 = smul.addr %s191, 2
        %s195 = sadd.s32 %s193, %s194
        %s196 = smul.addr %s195, 8
        %s197 = scalar_lea.vmem %s0, %s196
        %p198 = pneg %p53
        %p199 = pneg %p50
        %p200 = pneg %p74
        %p201 = pneg %p71
        %p202 = pneg %p95
        %p203 = pneg %p92
        %p204 = pneg %p116
        %p205 = pneg %p113
        %p206 = pneg %p144
        %p207 = pneg %p141
        %s208 = sand.u32 %s131, 1
        %s209 = scalar_lea.sflag [#allocation3], %s208
        %s210 = sand.u32 %s131, 1
        %s211 = smul.addr %s210, 4
        %s212 = scalar_lea.vmem [#allocation2], %s211
        %p213 = scmp.lt.s32.totalorder %s22, 1
        %s214 = scalar_select %p213, %s22, 1
        %p215 = scmp.lt.s32.totalorder %s23, 0
        %s216 = scalar_select %p215, %s23, 0
        %s217 = smul.addr %s214, 2
        %s218 = sadd.s32 %s216, %s217
        %s219 = smul.addr %s218, 8
        %s220 = scalar_lea.vmem %s0, %s219
        %v221 = vld [vmem:[%s220] sm:$0xff]
        %v222 = vld [vmem:[%s220 + $0x8] sm:$0xff]
        %v223 = vld [vmem:[%s1] sm:$0xff]
        %v224 = vld [vmem:[%s1 + $0x8] sm:$0xff]
        %226 = vset.pattern.permute.xlu0 0
        %227 = vperm.xlu0 %226, %v223
        %v228 = vpop.permute.xlu0 %227
        %231 = vset.pattern.permute.xlu0 0
        %232 = vperm.xlu0 %231, %v224
        %v233 = vpop.permute.xlu0 %232
        %v235 = vmul.f32 %v221, %v228
        %v236 = vmul.f32 %v222, %v233
        %v237 = vld [vmem:[%s2] sm:$0xff]
        %v238 = vld [vmem:[%s2 + $0x8] sm:$0xff]
        %240 = vset.pattern.permute.xlu0 0
        %241 = vperm.xlu0 %240, %v237
        %v242 = vpop.permute.xlu0 %241
        %245 = vset.pattern.permute.xlu0 0
        %246 = vperm.xlu0 %245, %v238
        %v247 = vpop.permute.xlu0 %246
        %v249 = vadd.f32 %v235, %v242
        %v250 = vadd.f32 %v236, %v247
        %v251 = vmax.f32 %v249, 0.0
        %v252 = vmax.f32 %v250, 0.0
        %v254 = vrot.slane %v251, 4
        %v256 = vadd.f32 %v251, %v254
        %v257 = vadd.f32 %v256, %v252
        %v259 = vrot.slane %v252, 4
        %v261 = vadd.f32 %v257, %v259
        %v262 = vld [vmem:[%s3] sm:$0xf]
        %vm263 = vcmask 31744
        %v265 = vsel %vm263, %v262, 0
        %vm267 = vcmask 1043456
        %v269 = vsel %vm267, %v261, 0
        %271 = vmatprep.subr.mxu0 0.0
        %272 = vmatpush1.msra.mxu0 0.0
        %273 = vmatprep.subr.mxu0 0.0
        %274 = vmatpush1.msra.mxu0 0.0
        %275 = vmatprep.subr.mxu0 0.0
        %276 = vmatpush1.msra.mxu0 0.0
        %277 = vmatprep.subr.mxu0 0.0
        %278 = vmatpush1.msra.mxu0 0.0
        %279 = vmatprep.subr.mxu0 0.0
        %280 = vmatpush1.msra.mxu0 0.0
        %281 = vmatprep.subr.mxu0 0.0
        %282 = vmatpush1.msra.mxu0 0.0
        %283 = vmatprep.subr.mxu0 0.0
        %284 = vmatpush1.msra.mxu0 0.0
        %285 = vmatprep.subr.mxu0 0.0
        %286 = vmatpush1.msra.mxu0 0.0
        %287 = vmatprep.subr.mxu0 0.0
        %288 = vmatpush1.msra.mxu0 0.0
        %289 = vmatprep.subr.mxu0 0.0
        %290 = vmatpush1.msra.mxu0 0.0
        %291 = vmatprep.subr.mxu0 0.0
        %292 = vmatpush1.msra.mxu0 0.0
        %293 = vmatprep.subr.mxu0 0.0
        %294 = vmatpush1.msra.mxu0 0.0
        %295 = vmatprep.subr.mxu0 0.0
        %296 = vmatpush1.msra.mxu0 0.0
        %297 = vmatprep.subr.mxu0 0.0
        %298 = vmatpush1.msra.mxu0 0.0
        %299 = vmatprep.subr.mxu0 0.0
        %300 = vmatpush1.msra.mxu0 0.0
        %301 = vmatprep.subr.mxu0 0.0
        %302 = vmatpush1.msra.mxu0 %v269
        %303 = vmatprep.subr.mxu0 0.0
        %304 = vmatpush2.msra.mxu0 0.0
        %305 = vmatprep.subr.mxu0 0.0
        %306 = vmatpush2.msra.mxu0 0.0
        %307 = vmatprep.subr.mxu0 0.0
        %308 = vmatpush2.msra.mxu0 0.0
        %309 = vmatprep.subr.mxu0 0.0
        %310 = vmatpush2.msra.mxu0 0.0
        %311 = vmatprep.subr.mxu0 0.0
        %312 = vmatpush2.msra.mxu0 0.0
        %313 = vmatprep.subr.mxu0 0.0
        %314 = vmatpush2.msra.mxu0 0.0
        %315 = vmatprep.subr.mxu0 0.0
        %316 = vmatpush2.msra.mxu0 0.0
        %317 = vmatprep.subr.mxu0 0.0
        %318 = vmatpush2.msra.mxu0 0.0
        %319 = vmatprep.subr.mxu0 0.0
        %320 = vmatpush2.msra.mxu0 0.0
        %321 = vmatprep.subr.mxu0 0.0
        %322 = vmatpush2.msra.mxu0 0.0
        %323 = vmatprep.subr.mxu0 0.0
        %324 = vmatpush2.msra.mxu0 0.0
        %325 = vmatprep.subr.mxu0 0.0
        %326 = vmatpush2.msra.mxu0 0.0
        %327 = vmatprep.subr.mxu0 0.0
        %328 = vmatpush2.msra.mxu0 0.0
        %329 = vmatprep.subr.mxu0 0.0
        %330 = vmatpush2.msra.mxu0 0.0
        %331 = vmatprep.subr.mxu0 0.0
        %332 = vmatpush2.msra.mxu0 0.0
        %333 = vmatprep.subr.mxu0 0.0
        %334 = vmatpush2.msra.mxu0 0.0
        %335 = vmatprep.mubr.f32.mxu0 0.0
        %336 = vmatmul.mubr.f32.gmra.mxu0 %v265
        %v337 = vpop.f32.mrf.mxu0
        %v338 = vadd.f32 0.0, %v337
        %v339 = vpop.f32.mrf.mxu0
        %340 = vdwg.mxu0
        %341 = vst [vmem:[%s212] sm:$0xf] %v338
        %s342 = sand.u32 %s131, 1
        %s343 = scalar_lea.sflag [#allocation3], %s342
        %s344 = sand.u32 %s131, 1
        %s345 = smul.addr %s344, 4
        %s346 = scalar_lea.vmem [#allocation2], %s345
        // Predicated region
        $region37: #{tpu_custom_call.1} parent=35 // pred_check
          %p347 = pneg %p141
        $region38: #{tpu_custom_call.1} parent=35 // pred_check_branch
          %349 = sbr.rel (%p347) target = $region40
        $region39: #{tpu_custom_call.1} parent=35 // pred_region
          %s351 = ssub.s32 64, 64
          %352 = vsyncadd %s343, %s351
          %s353 = sadd.s32 %s23, %s22
          %s354 = smul.addr %s353, 64
          %s355 = scalar_lea.hbm %s4, %s354
          %s357 = sshll.u32 %s346, 4
          %s358 = int_to_ptr.vmem [resolvable:$true] %s357
          %360 = dma.vmem_to_hbm [thread:$0]  %s358, 64, %s355, %s343
        $region40: #{tpu_custom_call.1} parent=35 // pred_fallthru
          _
      $region36: #{tpu_custom_call.1} parent=5 // pred_fallthru
        _
      %p361 = scmp.le.s32.totalorder 2, %s13
      // Predicated region
      $region41: #{tpu_custom_call.1} parent=5 // pred_check
        %p362 = pneg %p361
      $region42: #{tpu_custom_call.1} parent=5 // pred_check_branch
        %364 = sbr.rel (%p362) target = $region44
      $region43: #{tpu_custom_call.1} parent=5 // pred_region
        %s365 = ssub.s32 %s13, 2
        // Predicated region
        $region45: #{tpu_custom_call.1} parent=43 // pred_check
          %p366 = pneg %p147
        $region46: #{tpu_custom_call.1} parent=43 // pred_check_branch
          %368 = sbr.rel (%p366) target = $region48
        $region47: #{tpu_custom_call.1} parent=43 // pred_region
          %s369 = sand.u32 %s132, 1
          %s370 = scalar_lea.sflag [#allocation3], %s369
          %s371 = sand.u32 %s132, 1
          %s372 = smul.addr %s371, 4
          %s373 = scalar_lea.vmem [#allocation2], %s372
          %374 = dma.done %s370, 64
        $region48: #{tpu_custom_call.1} parent=43 // pred_fallthru
          _
      $region44: #{tpu_custom_call.1} parent=5 // pred_fallthru
        _
    $region6: #{tpu_custom_call.1} parent=1 // loop_footer
      %s17 = sadd.s32 1, %s13
    $region7: #{tpu_custom_call.1} parent=1 // loop_footer_branch
      %12 = sbr.rel target = $region3
    $region8: #{tpu_custom_call.1} parent=1 // loop_exit
      _
    %375 = vsyncpa [#allocation3], 1
    %s376 = scalar_lea.sflag [#allocation3], 1
    %377 = vsyncpa %s376, 1

</llo_original>
